<compile_context>
chip_gen: v5e
topology: v5e:2x2
jax: 0.10.0
libtpu: 0.0.40
codegen_flags: <defaults>
</compile_context>

<pallas_src>
import jax
import jax.numpy as jnp
from jax import lax
from jax.experimental import pallas as pl
from jax.experimental.pallas import tpu as pltpu

N = 100        # number of Lorenz96 sites (hard-coded 100 in the PyTorch module)
LANES = 128    # TPU vreg lane width
B_TILE = 8     # batch rows per tile = f32 sublanes per vreg


def _lorenz96_kernel(theta_ref, x_ref, f_ref):
    # theta_ref: (1,)              f32 in SMEM  -- scalar forcing
    # x_ref:     (B_TILE, LANES)   f32 in VMEM  -- states along sublanes,
    #                                              sites 0..99 in lanes 0..99
    # f_ref:     (B_TILE, LANES)   f32 in VMEM
    theta = theta_ref[0]                     # scalar read (scalar slots, free)
    x = x_ref[...]                           # single dense tile load

    lane = lax.broadcasted_iota(jnp.int32, x.shape, 1)   # per-lane index

    # Wrap values (per batch row) needed to turn the mod-128 rotations into
    # the mod-100 cyclic indexing of the spec.
    x0 = x[:, 0:1]        # x[0]
    x98 = x[:, 98:99]     # x[98]
    x99 = x[:, 99:100]    # x[99]

    # pltpu.roll == jnp.roll semantics: roll(x, s)[n] = x[(n - s) % LANES].
    # Positive shifts only; fix the few lanes where mod-128 != mod-100.
    x_p1 = pltpu.roll(x, LANES - 1, axis=1)          # -> x[(n+1) % 128]
    x_p1 = jnp.where(lane == N - 1, x0, x_p1)        # lane 99 -> x[0]

    x_m1 = pltpu.roll(x, 1, axis=1)                  # -> x[(n-1) % 128]
    x_m1 = jnp.where(lane == 0, x99, x_m1)           # lane 0  -> x[99]

    x_m2 = pltpu.roll(x, 2, axis=1)                  # -> x[(n-2) % 128]
    x_m2 = jnp.where(lane == 0, x98, x_m2)           # lane 0  -> x[98]
    x_m2 = jnp.where(lane == 1, x99, x_m2)           # lane 1  -> x[99]

    # 3 VALU ops + scalar-broadcast add; one unmasked (8,128) dense store.
    f_ref[...] = (x_p1 - x_m2) * x_m1 - x + theta


def lorenz96_forward(t, x, theta):
    """Pallas equivalent of Lorenz96(theta).forward(t, x).

    Args:
      t:     unused time scalar (API parity with the PyTorch module).
      x:     (100,) state vector, or (B, 100) batch of states.
      theta: scalar forcing parameter.
    Returns:
      (100,) or (B, 100) float32 derivative(s).
    """
    del t  # autonomous RHS, exactly like the PyTorch module

    x = jnp.asarray(x, jnp.float32)
    single = (x.ndim == 1)
    if single:
        x = x[None, :]
    b, n = x.shape
    assert n == N, f"expected {N} sites, got {n}"

    b_pad = ((b + B_TILE - 1) // B_TILE) * B_TILE
    # Single layout-plumbing pad: batch -> multiple of 8 sublanes, sites -> 128 lanes.
    xs = jnp.pad(x, ((0, b_pad - b), (0, LANES - N)))
    theta_arr = jnp.asarray(theta, jnp.float32).reshape((1,))

    grid = (b_pad // B_TILE,)
    f_pad = pl.pallas_call(
        _lorenz96_kernel,
        out_shape=jax.ShapeDtypeStruct((b_pad, LANES), jnp.float32),
        grid=grid,
        in_specs=[
            pl.BlockSpec(memory_space=pltpu.MemorySpace.SMEM),        # theta scalar
            pl.BlockSpec((B_TILE, LANES), lambda i: (i, 0)),          # state tile
        ],
        out_specs=pl.BlockSpec((B_TILE, LANES), lambda i: (i, 0)),
        compiler_params=pltpu.CompilerParams(
            dimension_semantics=("parallel",)),   # lets v7x split batch tiles
    )(theta_arr, xs)

    f = f_pad[:b, :N]
    return f[0] if single else f


def _reference_forward(t, x, theta):
    """Pure-JAX reference mirroring the PyTorch list construction."""
    del t
    x = jnp.asarray(x, jnp.float32)
    theta = jnp.asarray(theta, jnp.float32)
    n = jnp.arange(N)
    return ((x[(n + 1) % N] - x[(n + 98) % N]) * x[(n + 99) % N]
            - x[n % N] + theta).astype(jnp.float32)


if __name__ == "__main__":
    theta = 8.0
    t = 0.0  # unused

    # Single-state forward, exactly the module's API: x is (100,).
    key = jax.random.PRNGKey(0)
    x = jax.random.uniform(key, (N,), dtype=jnp.float32, minval=-1.0, maxval=1.0)
    f = jax.block_until_ready(lorenz96_forward(t, x, theta))
    f_ref = _reference_forward(t, x, theta)
    assert f.shape == (N,) and f.dtype == jnp.float32
    assert jnp.allclose(f, f_ref, rtol=1e-6, atol=1e-6), (f, f_ref)

    # Small ensemble batch (fills the sublanes; grid=(2,) exercises the
    # parallel batch-tile axis).
    xb = jax.random.uniform(jax.random.PRNGKey(1), (16, N),
                            dtype=jnp.float32, minval=-1.0, maxval=1.0)
    fb = jax.block_until_ready(lorenz96_forward(t, xb, theta))
    fb_ref = jax.vmap(lambda xi: _reference_forward(t, xi, theta))(xb)
    assert fb.shape == (16, N) and fb.dtype == jnp.float32
    assert jnp.allclose(fb, fb_ref, rtol=1e-6, atol=1e-6)

    print("KERNEL_OK")
</pallas_src>

<mosaic_0001>
module attributes {stable_mosaic.version = 11 : i64} {
  func.func @_lorenz96_kernel(%arg0: i32, %arg1: memref<1xf32, #tpu.memory_space<smem>>, %arg2: memref<8x128xf32, #tpu.memory_space<vmem>>, %arg3: memref<8x128xf32, #tpu.memory_space<vmem>>) attributes {dimension_semantics = [#tpu.dimension_semantics<parallel>], iteration_bounds = array<i64: 1>, scalar_prefetch = 0 : i64, scratch_operands = 0 : i64, tpu.core_type = #tpu.core_type<tc>, window_params = [{transform_indices = @transform_0, window_bounds = array<i64: 1>}, {transform_indices = @transform_1, window_bounds = array<i64: 8, 128>}, {transform_indices = @transform_2, window_bounds = array<i64: 8, 128>}]} {
    %c0 = arith.constant 0 : index
    %0 = memref.load %arg1[%c0] : memref<1xf32, #tpu.memory_space<smem>>
    %c0_0 = arith.constant 0 : index
    %c0_1 = arith.constant 0 : index
    %1 = vector.load %arg2[%c0_0, %c0_1] : memref<8x128xf32, #tpu.memory_space<vmem>>, vector<8x128xf32>
    %2 = tpu.iota {dimensions = array<i32: 1>} : vector<8x128xi32>
    %3 = vector.extract_strided_slice %1 {offsets = [0, 0], sizes = [8, 1], strides = [1, 1]} : vector<8x128xf32> to vector<8x1xf32>
    %4 = vector.extract_strided_slice %1 {offsets = [0, 98], sizes = [8, 1], strides = [1, 1]} : vector<8x128xf32> to vector<8x1xf32>
    %5 = vector.extract_strided_slice %1 {offsets = [0, 99], sizes = [8, 1], strides = [1, 1]} : vector<8x128xf32> to vector<8x1xf32>
    %c127_i32 = arith.constant 127 : i32
    %6 = tpu.dynamic_rotate %1 by %c127_i32 dim 1 : vector<8x128xf32>, i32 -> vector<8x128xf32>
    %c99_i32 = arith.constant 99 : i32
    %7 = vector.broadcast %c99_i32 : i32 to vector<8x128xi32>
    %8 = arith.cmpi eq, %2, %7 : vector<8x128xi32>
    %9 = vector.shape_cast %3 : vector<8x1xf32> to vector<8x1xf32>
    %10 = vector.broadcast %9 : vector<8x1xf32> to vector<8x128xf32>
    %11 = arith.select %8, %10, %6 : vector<8x128xi1>, vector<8x128xf32>
    %c1_i32 = arith.constant 1 : i32
    %12 = tpu.dynamic_rotate %1 by %c1_i32 dim 1 : vector<8x128xf32>, i32 -> vector<8x128xf32>
    %c0_i32 = arith.constant 0 : i32
    %13 = vector.broadcast %c0_i32 : i32 to vector<8x128xi32>
    %14 = arith.cmpi eq, %2, %13 : vector<8x128xi32>
    %15 = vector.shape_cast %5 : vector<8x1xf32> to vector<8x1xf32>
    %16 = vector.broadcast %15 : vector<8x1xf32> to vector<8x128xf32>
    %17 = arith.select %14, %16, %12 : vector<8x128xi1>, vector<8x128xf32>
    %c2_i32 = arith.constant 2 : i32
    %18 = tpu.dynamic_rotate %1 by %c2_i32 dim 1 : vector<8x128xf32>, i32 -> vector<8x128xf32>
    %c0_i32_2 = arith.constant 0 : i32
    %19 = vector.broadcast %c0_i32_2 : i32 to vector<8x128xi32>
    %20 = arith.cmpi eq, %2, %19 : vector<8x128xi32>
    %21 = vector.shape_cast %4 : vector<8x1xf32> to vector<8x1xf32>
    %22 = vector.broadcast %21 : vector<8x1xf32> to vector<8x128xf32>
    %23 = arith.select %20, %22, %18 : vector<8x128xi1>, vector<8x128xf32>
    %c1_i32_3 = arith.constant 1 : i32
    %24 = vector.broadcast %c1_i32_3 : i32 to vector<8x128xi32>
    %25 = arith.cmpi eq, %2, %24 : vector<8x128xi32>
    %26 = vector.shape_cast %5 : vector<8x1xf32> to vector<8x1xf32>
    %27 = vector.broadcast %26 : vector<8x1xf32> to vector<8x128xf32>
    %28 = arith.select %25, %27, %23 : vector<8x128xi1>, vector<8x128xf32>
    %29 = arith.subf %11, %28 : vector<8x128xf32>
    %30 = arith.mulf %29, %17 : vector<8x128xf32>
    %31 = arith.subf %30, %1 : vector<8x128xf32>
    %32 = vector.broadcast %0 : f32 to vector<8x128xf32>
    %33 = arith.addf %31, %32 : vector<8x128xf32>
    %c0_4 = arith.constant 0 : index
    %c0_5 = arith.constant 0 : index
    %34 = vector.load %arg3[%c0_4, %c0_5] : memref<8x128xf32, #tpu.memory_space<vmem>>, vector<8x128xf32>
    tpu.vector_store %arg3[%c0_4, %c0_5], %33 {strides = array<i32>} : memref<8x128xf32, #tpu.memory_space<vmem>>, vector<8x128xf32>,
    return
  }
  func.func @transform_0(%arg0: i32) -> i32 {
    %c0_i32 = arith.constant 0 : i32
    %c0_i32_0 = arith.constant 0 : i32
    return %c0_i32 : i32
  }
  func.func @transform_1(%arg0: i32) -> (i32, i32) {
    %c0_i32 = arith.constant 0 : i32
    %c0_i32_0 = arith.constant 0 : i32
    return %arg0, %c0_i32 : i32, i32
  }
  func.func @transform_2(%arg0: i32) -> (i32, i32) {
    %c0_i32 = arith.constant 0 : i32
    %c0_i32_0 = arith.constant 0 : i32
    return %arg0, %c0_i32 : i32, i32
  }
}

</mosaic_0001>

<llo_original>
// kernel: tpu_custom_call.1
$region0: #{tpu_custom_call.1}
  #allocation0 [shape = 'u32[]', space=smem, size = 0x4, offset = 0x4, fixed_abs, tag = 'smem constant byte address 0x4 - core index']
  #allocation1 [shape = 'u32[72,128]{1,0:T(1,128)}', space=vmem, size = 0x9000, scoped, tag = 'internal scratch']
  #allocation2 [shape = 'f32[1]{0:T(128)S(6)}', space=smem, size = 0x200, scoped, tag = 'scoped memory for tpu_custom_call.1']
  %s0 = inlined_call_operand.<no memory space> [shape: f32[1], index: 0, kind: input, shape index: {}]
  %s1 = inlined_call_operand.hbm [shape: f32[8,128], index: 1, kind: input, shape index: {}]
  %s2 = inlined_call_operand.hbm [shape: f32[8,128], index: 2, kind: output, shape index: {}]
  %s3 = sld [smem:[#allocation0]]
  $region22: #{tpu_custom_call.1} parent=0
    _
  %s5 = ssub.s32 1, %s3
  %s6 = scalar_select 0, %s5, %s3
  %7 = sst [smem:[#allocation2]] %s0
  $region1: #{tpu_custom_call.1} parent=0
    #allocation3 [shape = 'u8[4096]{0}', space=vmem, size = 0x1000, scoped, tag = 'input window, operand 1, single buffered']
    #allocation4 [shape = 's32[1]{0}', space=sflag, size = 0x4, scoped, tag = 'scoped memory for tpu_custom_call.1']
    #allocation5 [shape = 's32[1]{0}', space=sflag, size = 0x4, scoped, tag = 'scoped memory for tpu_custom_call.1']
    #allocation6 [shape = 'u8[4096]{0}', space=vmem, size = 0x1000, scoped, tag = 'output window, operand 0, single buffered']
    %8 = vsyncpa [#allocation4], 0
    %9 = vsyncpa [#allocation5], 0
    // Predicated region
    $region2: #{tpu_custom_call.1} parent=1 // pred_check
      _
    $region3: #{tpu_custom_call.1} parent=1 // pred_check_branch
      %11 = sbr.rel (0) target = $region5
    $region4: #{tpu_custom_call.1} parent=1 // pred_region
      _
    $region5: #{tpu_custom_call.1} parent=1 // pred_fallthru
      _
    // Predicated region
    $region6: #{tpu_custom_call.1} parent=1 // pred_check
      _
    $region7: #{tpu_custom_call.1} parent=1 // pred_check_branch
      %13 = sbr.rel (0) target = $region9
    $region8: #{tpu_custom_call.1} parent=1 // pred_region
      %15 = vsyncadd [#allocation4], 0
      %s17 = sshll.u32 %s1, 4
      %s18 = int_to_ptr.hbm [resolvable:$true] %s17
      %s19 = sshll.u32 [#allocation3], 4
      %s20 = int_to_ptr.vmem [resolvable:$true] %s19
      %22 = dma.hbm_to_vmem [thread:$0]  %s18, 128, %s20, [#allocation4]
    $region9: #{tpu_custom_call.1} parent=1 // pred_fallthru
      _
    // Predicated region
    $region10: #{tpu_custom_call.1} parent=1 // pred_check
      _
    $region11: #{tpu_custom_call.1} parent=1 // pred_check_branch
      %24 = sbr.rel (0) target = $region13
    $region12: #{tpu_custom_call.1} parent=1 // pred_region
      %26 = dma.done [#allocation4], 128
    $region13: #{tpu_custom_call.1} parent=1 // pred_fallthru
      _
    %s27 = sld [smem:[#allocation2]]
    %v28 = vld [vmem:[#allocation3] sm:$0xff]
    %v29 = vlaneseq
    %v30 = vand.u32 %v29, 127
    %31 = vrot.lane.b32.xlu0 %v28, 127
    %v32 = vpop.permute.xlu0 %31
    %vm33 = vcmp.eq.s32.totalorder %v30, 99
    %35 = vset.pattern.permute.xlu0 0
    %36 = vperm.xlu0 %35, %v28
    %v37 = vpop.permute.xlu0 %36
    %v39 = vsel %vm33, %v37, %v32
    %40 = vrot.lane.b32.xlu0 %v28, 1
    %v41 = vpop.permute.xlu0 %40
    %vm42 = vcmp.eq.s32.totalorder %v30, 0
    %43 = vset.pattern.permute.xlu0 99
    %44 = vperm.xlu0 %43, %v28
    %v45 = vpop.permute.xlu0 %44
    %v47 = vsel %vm42, %v45, %v41
    %48 = vrot.lane.b32.xlu0 %v28, 2
    %v49 = vpop.permute.xlu0 %48
    %50 = vset.pattern.permute.xlu0 98
    %51 = vperm.xlu0 %50, %v28
    %v52 = vpop.permute.xlu0 %51
    %v54 = vsel %vm42, %v52, %v49
    %vm55 = vcmp.eq.s32.totalorder %v30, 1
    %v56 = vsel %vm55, %v45, %v54
    %v57 = vsub.f32 %v39, %v56
    %v58 = vmul.f32 %v57, %v47
    %v59 = vsub.f32 %v58, %v28
    %v60 = vstv %s27
    %v61 = vadd.f32 %v59, %v60
    %62 = vst [vmem:[#allocation6] sm:$0xff] %v61
    // Predicated region
    $region14: #{tpu_custom_call.1} parent=1 // pred_check
      _
    $region15: #{tpu_custom_call.1} parent=1 // pred_check_branch
      %64 = sbr.rel (0) target = $region17
    $region16: #{tpu_custom_call.1} parent=1 // pred_region
      %66 = vsyncadd [#allocation5], 0
      %s68 = sshll.u32 [#allocation6], 4
      %s69 = int_to_ptr.vmem [resolvable:$true] %s68
      %s70 = sshll.u32 %s2, 4
      %s71 = int_to_ptr.hbm [resolvable:$true] %s70
      %73 = dma.vmem_to_hbm [thread:$0]  %s69, 128, %s71, [#allocation5]
    $region17: #{tpu_custom_call.1} parent=1 // pred_fallthru
      _
    // Predicated region
    $region18: #{tpu_custom_call.1} parent=1 // pred_check
      _
    $region19: #{tpu_custom_call.1} parent=1 // pred_check_branch
      %75 = sbr.rel (0) target = $region21
    $region20: #{tpu_custom_call.1} parent=1 // pred_region
      %77 = dma.done [#allocation5], 128
    $region21: #{tpu_custom_call.1} parent=1 // pred_fallthru
      _
    %78 = vsyncpa [#allocation4], 1
    %79 = vsyncpa [#allocation5], 1

</llo_original>
